<compile_context>
chip_gen: v5e
topology: v5e:2x2
jax: 0.10.0
libtpu: 0.0.40
codegen_flags: <defaults>
</compile_context>

<pallas_src>
import jax
import jax.numpy as jnp
from jax.experimental import pallas as pl
from jax.experimental.pallas import tpu as pltpu


def attention_concat_kernel(x_ref, hb_ref, w1a_ref, w2_ref, b2_ref, o_ref):
    # x_ref : (TB, S, F)  input vectors for TB batch elements
    # hb_ref: (TB, F)     precomputed  last_hidden_state @ W1b^T + b1
    # w1a   : (F, F)      fc_1 weight, input-vector half, (in, out) layout
    # w2    : (1, F)      fc_2 weight as a lane-dense row
    # b2    : (1,) SMEM   fc_2 bias (scalar)
    # o_ref : (TB, F)     context vectors
    tb, s, f = x_ref.shape
    x = x_ref[...]                                                   # (TB, S, F)

    # fc_1, input-vector half: single (TB*S, F) @ (F, F) MXU matmul
    pre = jnp.dot(x.reshape(tb * s, f), w1a_ref[...],
                  preferred_element_type=jnp.float32).reshape(tb, s, f)
    # add the hoisted hidden-state half (broadcast over S), then tanh (EUP)
    a1 = jnp.tanh(pre + hb_ref[...][:, None, :])                     # (TB, S, F)

    # fc_2 -> alignment scores: VPU multiply + lane reduce (avoids N=1 matmul)
    scores = jnp.sum(a1 * w2_ref[...], axis=-1) + b2_ref[0]          # (TB, S)

    # softmax over the sequence axis (PyTorch dim=1 of (B, S, 1))
    m = jnp.max(scores, axis=-1, keepdims=True)                      # (TB, 1)
    e = jnp.exp(scores - m)
    attn = e * pl.reciprocal(jnp.sum(e, axis=-1, keepdims=True), approx=True)

    # weighted linear combination -> context vectors (TB, F)
    z = jnp.sum(x * attn[:, :, None], axis=1)
    o_ref[...] = z.astype(o_ref.dtype)


def attention_concat(input_vectors, last_hidden_state, params, *, tb=8):
    """input_vectors: (B, S, F) f32; last_hidden_state: (B, F) f32 -> (B, 1, F) f32."""
    B, S, F = input_vectors.shape
    w1, b1, w2, b2 = params["w1"], params["b1"], params["w2"], params["b2"]

    # PyTorch Linear: y = x @ W.T + b.  fc_1.weight is (F, 2F); split & transpose.
    w1a = jnp.transpose(w1[:, :F])                    # (F, F) acts on input_vectors
    w1b = jnp.transpose(w1[:, F:])                    # (F, F) acts on hidden state
    # Hoist the hidden-state half of fc_1 out of the kernel (one batched matmul).
    hb = last_hidden_state @ w1b + b1[None, :]        # (B, F)
    w2r = w2.reshape(1, F)                            # (1, F) lane-dense row
    b2s = b2.reshape(1).astype(jnp.float32)           # scalar -> SMEM

    # Batch-tile the grid; pad B to a multiple of TB if needed.
    tb = max(1, min(tb, B))
    B_pad = ((B + tb - 1) // tb) * tb
    if B_pad != B:
        pad = B_pad - B
        input_vectors = jnp.pad(input_vectors, ((0, pad), (0, 0), (0, 0)))
        hb = jnp.pad(hb, ((0, pad), (0, 0)))
    grid = (B_pad // tb,)

    out2d = pl.pallas_call(
        attention_concat_kernel,
        out_shape=jax.ShapeDtypeStruct((B_pad, F), input_vectors.dtype),
        grid_spec=pltpu.PrefetchScalarGridSpec(
            num_scalar_prefetch=0,
            grid=grid,
            in_specs=[
                pl.BlockSpec((tb, S, F), lambda i: (i, 0, 0)),   # input_vectors tile
                pl.BlockSpec((tb, F), lambda i: (i, 0)),         # hoisted h-half
                pl.BlockSpec((F, F), lambda i: (0, 0)),          # W1a (resident)
                pl.BlockSpec((1, F), lambda i: (0, 0)),          # W2 row (resident)
                pl.BlockSpec(memory_space=pltpu.MemorySpace.SMEM),  # b2 scalar
            ],
            out_specs=pl.BlockSpec((tb, F), lambda i: (i, 0)),   # lane/sublane-dense
        ),
        compiler_params=pltpu.CompilerParams(
            dimension_semantics=("parallel",)),
    )(input_vectors, hb, w1a, w2r, b2s)

    return out2d[:B].reshape(B, 1, F)


def attention_concat_ref(input_vectors, last_hidden_state, params):
    """Pure-JAX reference matching the PyTorch forward (alignment='concat')."""
    B, S, F = input_vectors.shape
    h = jnp.broadcast_to(last_hidden_state[:, None, :], (B, S, F))
    cat = jnp.concatenate([input_vectors, h], axis=-1)                 # (B, S, 2F)
    a1 = jnp.tanh(cat @ params["w1"].T + params["b1"])                 # (B, S, F)
    scores = a1 @ params["w2"].T + params["b2"]                        # (B, S, 1)
    attn = jax.nn.softmax(scores, axis=1)
    return jnp.sum(input_vectors * attn, axis=1, keepdims=True)        # (B, 1, F)


if __name__ == "__main__":
    B, S, F = 16, 8, 32      # batch, seq, hidden_size

    key = jax.random.PRNGKey(0)
    k_x, k_h, k_w1, k_b1, k_w2, k_b2 = jax.random.split(key, 6)

    input_vectors = jax.random.normal(k_x, (B, S, F), dtype=jnp.float32)
    last_hidden_state = jax.random.normal(k_h, (B, F), dtype=jnp.float32)

    # Deterministic parameter init (shapes per nn.Linear in __init__, alignment='concat')
    params = {
        "w1": jax.random.normal(k_w1, (F, 2 * F), dtype=jnp.float32) * 0.1,  # fc_1.weight
        "b1": jax.random.normal(k_b1, (F,), dtype=jnp.float32) * 0.1,        # fc_1.bias
        "w2": jax.random.normal(k_w2, (1, F), dtype=jnp.float32) * 0.1,      # fc_2.weight
        "b2": jax.random.normal(k_b2, (1,), dtype=jnp.float32) * 0.1,        # fc_2.bias
    }

    z = attention_concat(input_vectors, last_hidden_state, params, tb=8)
    z = jax.block_until_ready(z)

    z_ref = attention_concat_ref(input_vectors, last_hidden_state, params)
    assert z.shape == (B, 1, F)
    # slightly loose tolerance: softmax denom uses the EUP approximate reciprocal
    assert jnp.allclose(z, z_ref, atol=2e-3, rtol=2e-3), "mismatch vs reference"

    print("KERNEL_OK")
</pallas_src>

<mosaic_0001>
module attributes {stable_mosaic.version = 11 : i64} {
  func.func @attention_concat_kernel(%arg0: i32, %arg1: memref<8x8x32xf32, #tpu.memory_space<vmem>>, %arg2: memref<8x32xf32, #tpu.memory_space<vmem>>, %arg3: memref<32x32xf32, #tpu.memory_space<vmem>>, %arg4: memref<1x32xf32, #tpu.memory_space<vmem>>, %arg5: memref<1xf32, #tpu.memory_space<smem>>, %arg6: memref<8x32xf32, #tpu.memory_space<vmem>>) attributes {dimension_semantics = [#tpu.dimension_semantics<parallel>], iteration_bounds = array<i64: 2>, scalar_prefetch = 0 : i64, scratch_operands = 0 : i64, tpu.core_type = #tpu.core_type<tc>, window_params = [{transform_indices = @transform_0, window_bounds = array<i64: 8, 8, 32>}, {transform_indices = @transform_1, window_bounds = array<i64: 8, 32>}, {pipeline_mode = #tpu.pipeline_mode<synchronous>, transform_indices = @transform_2, window_bounds = array<i64: 32, 32>}, {pipeline_mode = #tpu.pipeline_mode<synchronous>, transform_indices = @transform_3, window_bounds = array<i64: 1, 32>}, {transform_indices = @transform_4, window_bounds = array<i64: 1>}, {transform_indices = @transform_5, window_bounds = array<i64: 8, 32>}]} {
    %c0 = arith.constant 0 : index
    %c0_0 = arith.constant 0 : index
    %c0_1 = arith.constant 0 : index
    %0 = vector.load %arg1[%c0, %c0_0, %c0_1] : memref<8x8x32xf32, #tpu.memory_space<vmem>>, vector<8x8x32xf32>
    %1 = vector.shape_cast %0 : vector<8x8x32xf32> to vector<64x32xf32>
    %c0_2 = arith.constant 0 : index
    %c0_3 = arith.constant 0 : index
    %2 = vector.load %arg3[%c0_2, %c0_3] : memref<32x32xf32, #tpu.memory_space<vmem>>, vector<32x32xf32>
    %cst = arith.constant dense<0.000000e+00> : vector<64x32xf32>
    %3 = tpu.matmul %1, %2, %cst {dimension_numbers = #tpu.dot_dimension_numbers<[1], [0], [0], [1], [0, 0, 1, 1], [], []>} : vector<64x32xf32>, vector<32x32xf32>, vector<64x32xf32> -> vector<64x32xf32>
    %4 = vector.shape_cast %3 : vector<64x32xf32> to vector<8x8x32xf32>
    %c0_4 = arith.constant 0 : index
    %c0_5 = arith.constant 0 : index
    %5 = vector.load %arg2[%c0_4, %c0_5] : memref<8x32xf32, #tpu.memory_space<vmem>>, vector<8x32xf32>
    %6 = vector.shape_cast %5 : vector<8x32xf32> to vector<8x1x32xf32>
    %7 = vector.broadcast %6 : vector<8x1x32xf32> to vector<8x8x32xf32>
    %8 = arith.addf %4, %7 : vector<8x8x32xf32>
    %9 = math.tanh %8 : vector<8x8x32xf32>
    %c0_6 = arith.constant 0 : index
    %c0_7 = arith.constant 0 : index
    %10 = vector.load %arg4[%c0_6, %c0_7] : memref<1x32xf32, #tpu.memory_space<vmem>>, vector<1x32xf32>
    %11 = vector.shape_cast %10 : vector<1x32xf32> to vector<1x1x32xf32>
    %12 = vector.broadcast %11 : vector<1x1x32xf32> to vector<8x8x32xf32>
    %13 = arith.mulf %9, %12 : vector<8x8x32xf32>
    %cst_8 = arith.constant dense<0.000000e+00> : vector<8x8xf32>
    %14 = vector.multi_reduction <add>, %13, %cst_8 [2] : vector<8x8x32xf32> to vector<8x8xf32>
    %c0_9 = arith.constant 0 : index
    %15 = memref.load %arg5[%c0_9] : memref<1xf32, #tpu.memory_space<smem>>
    %16 = vector.broadcast %15 : f32 to vector<8x8xf32>
    %17 = arith.addf %14, %16 : vector<8x8xf32>
    %cst_10 = arith.constant dense<0xFF800000> : vector<8xf32>
    %18 = vector.multi_reduction <maximumf>, %17, %cst_10 [1] : vector<8x8xf32> to vector<8xf32>
    %19 = vector.shape_cast %18 : vector<8xf32> to vector<8x1xf32>
    %20 = vector.broadcast %19 : vector<8x1xf32> to vector<8x8xf32>
    %21 = arith.subf %17, %20 : vector<8x8xf32>
    %22 = math.exp %21 : vector<8x8xf32>
    %cst_11 = arith.constant dense<0.000000e+00> : vector<8xf32>
    %23 = vector.multi_reduction <add>, %22, %cst_11 [1] : vector<8x8xf32> to vector<8xf32>
    %24 = vector.shape_cast %23 : vector<8xf32> to vector<8x1xf32>
    %25 = tpu.reciprocal %24 {approx = true} : vector<8x1xf32> -> vector<8x1xf32>
    %26 = vector.broadcast %25 : vector<8x1xf32> to vector<8x8xf32>
    %27 = arith.mulf %22, %26 : vector<8x8xf32>
    %28 = vector.shape_cast %27 : vector<8x8xf32> to vector<8x8x1xf32>
    %29 = vector.broadcast %28 : vector<8x8x1xf32> to vector<8x8x32xf32>
    %30 = arith.mulf %0, %29 : vector<8x8x32xf32>
    %cst_12 = arith.constant dense<0.000000e+00> : vector<8x32xf32>
    %31 = vector.multi_reduction <add>, %30, %cst_12 [1] : vector<8x8x32xf32> to vector<8x32xf32>
    %c0_13 = arith.constant 0 : index
    %c0_14 = arith.constant 0 : index
    %32 = vector.load %arg6[%c0_13, %c0_14] : memref<8x32xf32, #tpu.memory_space<vmem>>, vector<8x32xf32>
    tpu.vector_store %arg6[%c0_13, %c0_14], %31 {strides = array<i32>} : memref<8x32xf32, #tpu.memory_space<vmem>>, vector<8x32xf32>,
    return
  }
  func.func @transform_0(%arg0: i32) -> (i32, i32, i32) {
    %c0_i32 = arith.constant 0 : i32
    %c0_i32_0 = arith.constant 0 : i32
    %c0_i32_1 = arith.constant 0 : i32
    return %arg0, %c0_i32, %c0_i32_0 : i32, i32, i32
  }
  func.func @transform_1(%arg0: i32) -> (i32, i32) {
    %c0_i32 = arith.constant 0 : i32
    %c0_i32_0 = arith.constant 0 : i32
    return %arg0, %c0_i32 : i32, i32
  }
  func.func @transform_2(%arg0: i32) -> (i32, i32) {
    %c0_i32 = arith.constant 0 : i32
    %c0_i32_0 = arith.constant 0 : i32
    %c0_i32_1 = arith.constant 0 : i32
    return %c0_i32, %c0_i32_0 : i32, i32
  }
  func.func @transform_3(%arg0: i32) -> (i32, i32) {
    %c0_i32 = arith.constant 0 : i32
    %c0_i32_0 = arith.constant 0 : i32
    %c0_i32_1 = arith.constant 0 : i32
    return %c0_i32, %c0_i32_0 : i32, i32
  }
  func.func @transform_4(%arg0: i32) -> i32 {
    %c0_i32 = arith.constant 0 : i32
    %c0_i32_0 = arith.constant 0 : i32
    return %c0_i32 : i32
  }
  func.func @transform_5(%arg0: i32) -> (i32, i32) {
    %c0_i32 = arith.constant 0 : i32
    %c0_i32_0 = arith.constant 0 : i32
    return %arg0, %c0_i32 : i32, i32
  }
}

</mosaic_0001>

<llo_original>
// kernel: tpu_custom_call.1
$region0: #{tpu_custom_call.1}
  #allocation0 [shape = 'u32[]', space=smem, size = 0x4, offset = 0x4, fixed_abs, tag = 'smem constant byte address 0x4 - core index']
  #allocation1 [shape = 'u32[72,128]{1,0:T(1,128)}', space=vmem, size = 0x9000, scoped, tag = 'internal scratch']
  #allocation2 [shape = 'f32[1]{0:T(128)S(6)}', space=smem, size = 0x200, scoped, tag = 'scoped memory for tpu_custom_call.1']
  %s0 = inlined_call_operand.hbm [shape: f32[16,8,32], index: 0, kind: input, shape index: {}]
  %s1 = inlined_call_operand.hbm [shape: f32[16,32], index: 1, kind: input, shape index: {}]
  %s2 = inlined_call_operand.hbm [shape: f32[32,32], index: 2, kind: input, shape index: {}]
  %s3 = inlined_call_operand.vmem [shape: f32[1,32], index: 3, kind: input, shape index: {}]
  %s4 = inlined_call_operand.<no memory space> [shape: f32[1], index: 4, kind: input, shape index: {}]
  %s5 = inlined_call_operand.hbm [shape: f32[16,32], index: 5, kind: output, shape index: {}]
  %s6 = sld [smem:[#allocation0]]
  $region65: #{tpu_custom_call.1} parent=0
    _
  %s8 = ssub.s32 1, %s6
  %s9 = scalar_select 0, %s8, %s6
  %10 = sst [smem:[#allocation2]] %s4
  $region1: #{tpu_custom_call.1} parent=0
    #allocation3 [shape = 'u8[65536]{0}', space=vmem, size = 0x10000, scoped, tag = 'input window, operand 0']
    #allocation4 [shape = 's32[2]{0}', space=sflag, size = 0x8, scoped, tag = 'scoped memory for tpu_custom_call.1']
    #allocation5 [shape = 's32[2]{0}', space=sflag, size = 0x8, scoped, tag = 'scoped memory for tpu_custom_call.1']
    #allocation6 [shape = 'u8[8192]{0}', space=vmem, size = 0x2000, scoped, tag = 'input window, operand 1']
    #allocation7 [shape = 's32[2]{0}', space=sflag, size = 0x8, scoped, tag = 'scoped memory for tpu_custom_call.1']
    #allocation8 [shape = 'u8[16384]{0}', space=vmem, size = 0x4000, scoped, tag = 'input window, operand 2, single buffered']
    #allocation9 [shape = 'u8[8192]{0}', space=vmem, size = 0x2000, scoped, tag = 'output window, operand 0']
    %11 = vsyncpa [#allocation4], 0
    %s12 = scalar_lea.sflag [#allocation4], 1
    %13 = vsyncpa %s12, 0
    %14 = vsyncpa [#allocation7], 0
    %s15 = scalar_lea.sflag [#allocation7], 1
    %16 = vsyncpa %s15, 0
    %17 = vsyncpa [#allocation5], 0
    %s18 = scalar_lea.sflag [#allocation5], 1
    %19 = vsyncpa %s18, 0
    loop: start=0, step=1, limit=4
    $region2: #{tpu_custom_call.1} parent=1 // loop_pre_header
      _
    $region3: #{tpu_custom_call.1} parent=1 // loop_header
      %s21 = sphi 0, %s25
      %p22 = scmp.ge.s32.totalorder %s21, 4
      %s31 = sphi 0, %s33
      %s34 = sphi 0, %s31
      %s35 = sphi 0, %s34
      %s51 = sphi 0, %s35
      %s57 = sphi 0, %s59
      %s60 = sphi 0, %s57
      %s61 = sphi 0, %s60
      %s77 = sphi 0, %s61
      %s81 = sphi 0, %s81
      %s83 = sphi 0, %s81
      %s84 = sphi 0, %s83
      %s98 = sphi 0, %s84
      %s102 = sphi 0, %s102
      %s104 = sphi 0, %s102
      %s105 = sphi 0, %s104
      %s119 = sphi 0, %s105
      %s123 = sphi 0, %s123
      %s125 = sphi 0, %s123
      %s126 = sphi 0, %s125
      %s140 = sphi 0, %s126
      %s146 = sphi 0, %s148
      %s149 = sphi 0, %s146
      %s150 = sphi 0, %s149
      %s166 = sphi 0, %s150
    $region4: #{tpu_custom_call.1} parent=1 // loop_header_branch
      %24 = sbr.rel (%p22) target = $region8
    $region5: #{tpu_custom_call.1} parent=1 // loop_body
      %s26 = ssub.s32 %s21, 1
      %s27 = ssub.s32 %s21, 2
      %s28 = sadd.s32 %s21, 1
      %s29 = ssub.s32 %s21, %s28
      %p30 = scmp.eq.s32.totalorder %s29, 0
      %s32 = sadd.s32 %s31, 1
      %s33 = scalar_select %p30, %s31, %s32
      %p36 = pneg %p30
      %p37 = scmp.eq.s32.totalorder %s21, 1
      %p38 = por %p36, %p37
      %p39 = scmp.ne.s32.totalorder %s31, %s34
      %p40 = scmp.eq.s32.totalorder %s21, 0
      %p41 = por %p39, %p40
      %p42 = scmp.ne.s32.totalorder %s31, %s34
      %p43 = scmp.eq.s32.totalorder %s26, 1
      %p44 = por %p42, %p43
      %p45 = scmp.ne.s32.totalorder %s34, %s35
      %p46 = scmp.eq.s32.totalorder %s26, 0
      %p47 = por %p45, %p46
      %p48 = scmp.ne.s32.totalorder %s34, %s35
      %p49 = scmp.eq.s32.totalorder %s27, 1
      %p50 = por %p48, %p49
      %p52 = scmp.ne.s32.totalorder %s35, %s51
      %p53 = scmp.eq.s32.totalorder %s27, 0
      %p54 = por %p52, %p53
      %s55 = ssub.s32 %s21, %s28
      %p56 = scmp.eq.s32.totalorder %s55, 0
      %s58 = sadd.s32 %s57, 1
      %s59 = scalar_select %p56, %s57, %s58
      %p62 = pneg %p56
      %p63 = scmp.eq.s32.totalorder %s21, 1
      %p64 = por %p62, %p63
      %p65 = scmp.ne.s32.totalorder %s57, %s60
      %p66 = scmp.eq.s32.totalorder %s21, 0
      %p67 = por %p65, %p66
      %p68 = scmp.ne.s32.totalorder %s57, %s60
      %p69 = scmp.eq.s32.totalorder %s26, 1
      %p70 = por %p68, %p69
      %p71 = scmp.ne.s32.totalorder %s60, %s61
      %p72 = scmp.eq.s32.totalorder %s26, 0
      %p73 = por %p71, %p72
      %p74 = scmp.ne.s32.totalorder %s60, %s61
      %p75 = scmp.eq.s32.totalorder %s27, 1
      %p76 = por %p74, %p75
      %p78 = scmp.ne.s32.totalorder %s61, %s77
      %p79 = scmp.eq.s32.totalorder %s27, 0
      %p80 = por %p78, %p79
      %s82 = sadd.s32 %s81, 1
      %p85 = scmp.eq.s32.totalorder %s21, 1
      %p86 = scmp.ne.s32.totalorder %s81, %s83
      %p87 = scmp.eq.s32.totalorder %s21, 0
      %p88 = por %p86, %p87
      %p89 = scmp.ne.s32.totalorder %s81, %s83
      %p90 = scmp.eq.s32.totalorder %s26, 1
      %p91 = por %p89, %p90
      %p92 = scmp.ne.s32.totalorder %s83, %s84
      %p93 = scmp.eq.s32.totalorder %s26, 0
      %p94 = por %p92, %p93
      %p95 = scmp.ne.s32.totalorder %s83, %s84
      %p96 = scmp.eq.s32.totalorder %s27, 1
      %p97 = por %p95, %p96
      %p99 = scmp.ne.s32.totalorder %s84, %s98
      %p100 = scmp.eq.s32.totalorder %s27, 0
      %p101 = por %p99, %p100
      %s103 = sadd.s32 %s102, 1
      %p106 = scmp.eq.s32.totalorder %s21, 1
      %p107 = scmp.ne.s32.totalorder %s102, %s104
      %p108 = scmp.eq.s32.totalorder %s21, 0
      %p109 = por %p107, %p108
      %p110 = scmp.ne.s32.totalorder %s102, %s104
      %p111 = scmp.eq.s32.totalorder %s26, 1
      %p112 = por %p110, %p111
      %p113 = scmp.ne.s32.totalorder %s104, %s105
      %p114 = scmp.eq.s32.totalorder %s26, 0
      %p115 = por %p113, %p114
      %p116 = scmp.ne.s32.totalorder %s104, %s105
      %p117 = scmp.eq.s32.totalorder %s27, 1
      %p118 = por %p116, %p117
      %p120 = scmp.ne.s32.totalorder %s105, %s119
      %p121 = scmp.eq.s32.totalorder %s27, 0
      %p122 = por %p120, %p121
      %s124 = sadd.s32 %s123, 1
      %p127 = scmp.eq.s32.totalorder %s21, 1
      %p128 = scmp.ne.s32.totalorder %s123, %s125
      %p129 = scmp.eq.s32.totalorder %s21, 0
      %p130 = por %p128, %p129
      %p131 = scmp.ne.s32.totalorder %s123, %s125
      %p132 = scmp.eq.s32.totalorder %s26, 1
      %p133 = por %p131, %p132
      %p134 = scmp.ne.s32.totalorder %s125, %s126
      %p135 = scmp.eq.s32.totalorder %s26, 0
      %p136 = por %p134, %p135
      %p137 = scmp.ne.s32.totalorder %s125, %s126
      %p138 = scmp.eq.s32.totalorder %s27, 1
      %p139 = por %p137, %p138
      %p141 = scmp.ne.s32.totalorder %s126, %s140
      %p142 = scmp.eq.s32.totalorder %s27, 0
      %p143 = por %p141, %p142
      %s144 = ssub.s32 %s21, %s28
      %p145 = scmp.eq.s32.totalorder %s144, 0
      %s147 = sadd.s32 %s146, 1
      %s148 = scalar_select %p145, %s146, %s147
      %p151 = pneg %p145
      %p152 = scmp.eq.s32.totalorder %s21, 1
      %p153 = por %p151, %p152
      %p154 = scmp.ne.s32.totalorder %s146, %s149
      %p155 = scmp.eq.s32.totalorder %s21, 0
      %p156 = por %p154, %p155
      %p157 = scmp.ne.s32.totalorder %s146, %s149
      %p158 = scmp.eq.s32.totalorder %s26, 1
      %p159 = por %p157, %p158
      %p160 = scmp.ne.s32.totalorder %s149, %s150
      %p161 = scmp.eq.s32.totalorder %s26, 0
      %p162 = por %p160, %p161
      %p163 = scmp.ne.s32.totalorder %s149, %s150
      %p164 = scmp.eq.s32.totalorder %s27, 1
      %p165 = por %p163, %p164
      %p167 = scmp.ne.s32.totalorder %s150, %s166
      %p168 = scmp.eq.s32.totalorder %s27, 0
      %p169 = por %p167, %p168
      %p170 = scmp.le.s32.totalorder 1, %s21
      %p171 = scmp.lt.s32.totalorder %s21, 3
      %p172 = pnand %p170, %p171
      %p173 = pneg %p172
      // Predicated region
      $region9: #{tpu_custom_call.1} parent=5 // pred_check
        _
      $region10: #{tpu_custom_call.1} parent=5 // pred_check_branch
        %175 = sbr.rel (%p172) target = $region12
      $region11: #{tpu_custom_call.1} parent=5 // pred_region
        %s176 = ssub.s32 %s21, 1
        // Predicated region
        $region13: #{tpu_custom_call.1} parent=11 // pred_check
          %p177 = pneg %p94
        $region14: #{tpu_custom_call.1} parent=11 // pred_check_branch
          %179 = sbr.rel (%p177) target = $region16
        $region15: #{tpu_custom_call.1} parent=11 // pred_region
          %181 = vsyncadd [#allocation7], 0
          %s182 = sshll.u32 %s2, 4
          %s183 = int_to_ptr.hbm [resolvable:$true] %s182
          %s184 = sshll.u32 [#allocation8], 4
          %s185 = int_to_ptr.vmem [resolvable:$true] %s184
          %190 = dma.hbm_to_vmem [thread:$0]  %s183, 512, %s185, [#allocation7], 128, 128, 8
        $region16: #{tpu_custom_call.1} parent=11 // pred_fallthru
          _
        // Predicated region
        $region17: #{tpu_custom_call.1} parent=11 // pred_check
          %p191 = pneg %p115
        $region18: #{tpu_custom_call.1} parent=11 // pred_check_branch
          %193 = sbr.rel (%p191) target = $region20
        $region19: #{tpu_custom_call.1} parent=11 // pred_region
          _
        $region20: #{tpu_custom_call.1} parent=11 // pred_fallthru
          _
        // Predicated region
        $region21: #{tpu_custom_call.1} parent=11 // pred_check
          %p194 = pneg %p136
        $region22: #{tpu_custom_call.1} parent=11 // pred_check_branch
          %196 = sbr.rel (%p194) target = $region24
        $region23: #{tpu_custom_call.1} parent=11 // pred_region
          _
        $region24: #{tpu_custom_call.1} parent=11 // pred_fallthru
          _
      $region12: #{tpu_custom_call.1} parent=5 // pred_fallthru
        _
      %p197 = scmp.lt.s32.totalorder %s21, 2
      // Predicated region
      $region25: #{tpu_custom_call.1} parent=5 // pred_check
        %p198 = pneg %p197
      $region26: #{tpu_custom_call.1} parent=5 // pred_check_branch
        %200 = sbr.rel (%p198) target = $region28
      $region27: #{tpu_custom_call.1} parent=5 // pred_region
        // Predicated region
        $region29: #{tpu_custom_call.1} parent=27 // pred_check
          %p201 = pneg %p41
        $region30: #{tpu_custom_call.1} parent=27 // pred_check_branch
          %203 = sbr.rel (%p201) target = $region32
        $region31: #{tpu_custom_call.1} parent=27 // pred_region
          %s204 = sand.u32 %s31, 1
          %s205 = scalar_lea.sflag [#allocation4], %s204
          %s206 = sand.u32 %s31, 1
          %s207 = smul.addr %s206, 64
          %s208 = scalar_lea.vmem [#allocation3], %s207
          %s209 = smul.u32 8, %s21
          %211 = vsyncadd %s205, 0
          %s212 = smul.addr %s209, 8
          %s213 = scalar_lea.hbm %s0, %s212
          %s214 = sshll.u32 %s213, 4
          %s215 = int_to_ptr.hbm [resolvable:$true] %s214
          %s216 = sshll.u32 %s208, 4
          %s217 = int_to_ptr.vmem [resolvable:$true] %s216
          %222 = dma.hbm_to_vmem [thread:$0]  %s215, 1024, %s217, %s205, 128, 128, 8
        $region32: #{tpu_custom_call.1} parent=27 // pred_fallthru
          _
        // Predicated region
        $region33: #{tpu_custom_call.1} parent=27 // pred_check
          %p223 = pneg %p67
        $region34: #{tpu_custom_call.1} parent=27 // pred_check_branch
          %225 = sbr.rel (%p223) target = $region36
        $region35: #{tpu_custom_call.1} parent=27 // pred_region
          %s226 = sand.u32 %s21, 1
          %s227 = scalar_lea.sflag [#allocation7], %s226
          %s228 = sand.u32 %s57, 1
          %s229 = smul.addr %s228, 8
          %s230 = scalar_lea.vmem [#allocation6], %s229
          %232 = vsyncadd %s227, 0
          %s233 = smul.addr %s21, 8
          %s234 = scalar_lea.hbm %s1, %s233
          %s236 = sshll.u32 %s234, 4
          %s237 = int_to_ptr.hbm [resolvable:$true] %s236
          %s238 = sshll.u32 %s230, 4
          %s239 = int_to_ptr.vmem [resolvable:$true] %s238
          %241 = dma.hbm_to_vmem [thread:$0]  %s237, 128, %s239, %s227
        $region36: #{tpu_custom_call.1} parent=27 // pred_fallthru
          _
      $region28: #{tpu_custom_call.1} parent=5 // pred_fallthru
        _
      %p242 = scmp.le.s32.totalorder 1, %s21
      %p243 = scmp.lt.s32.totalorder %s21, 3
      %p244 = pnand %p242, %p243
      %p245 = pneg %p244
      // Predicated region
      $region37: #{tpu_custom_call.1} parent=5 // pred_check
        _
      $region38: #{tpu_custom_call.1} parent=5 // pred_check_branch
        %247 = sbr.rel (%p244) target = $region40
      $region39: #{tpu_custom_call.1} parent=5 // pred_region
        %s248 = ssub.s32 %s21, 1
        %s249 = sand.u32 %s34, 1
        %s250 = scalar_lea.sflag [#allocation4], %s249
        %s251 = sand.u32 %s34, 1
        %s252 = smul.addr %s251, 64
        %s253 = scalar_lea.vmem [#allocation3], %s252
        // Predicated region
        $region41: #{tpu_custom_call.1} parent=39 // pred_check
          %p254 = pneg %p47
        $region42: #{tpu_custom_call.1} parent=39 // pred_check_branch
          %256 = sbr.rel (%p254) target = $region44
        $region43: #{tpu_custom_call.1} parent=39 // pred_region
          %258 = dma.done %s250, 1024
        $region44: #{tpu_custom_call.1} parent=39 // pred_fallthru
          _
        %s259 = sand.u32 %s26, 1
        %s260 = scalar_lea.sflag [#allocation7], %s259
        %s261 = sand.u32 %s60, 1
        %s262 = smul.addr %s261, 8
        %s263 = scalar_lea.vmem [#allocation6], %s262
        // Predicated region
        $region45: #{tpu_custom_call.1} parent=39 // pred_check
          %p264 = pneg %p73
        $region46: #{tpu_custom_call.1} parent=39 // pred_check_branch
          %266 = sbr.rel (%p264) target = $region48
        $region47: #{tpu_custom_call.1} parent=39 // pred_region
          %268 = dma.done %s260, 128
        $region48: #{tpu_custom_call.1} parent=39 // pred_fallthru
          _
        // Predicated region
        $region49: #{tpu_custom_call.1} parent=39 // pred_check
          %p269 = pneg %p94
        $region50: #{tpu_custom_call.1} parent=39 // pred_check_branch
          %271 = sbr.rel (%p269) target = $region52
        $region51: #{tpu_custom_call.1} parent=39 // pred_region
          %273 = dma.done [#allocation7], 512
        $region52: #{tpu_custom_call.1} parent=39 // pred_fallthru
          _
        %s274 = sand.u32 %s34, 1
        %s275 = scalar_lea.sflag [#allocation4], %s274
        %s276 = sand.u32 %s34, 1
        %s277 = smul.addr %s276, 64
        %s278 = scalar_lea.vmem [#allocation3], %s277
        %p279 = pneg %p47
        %p280 = pneg %p44
        %s281 = sand.u32 %s26, 1
        %s282 = scalar_lea.sflag [#allocation7], %s281
        %s283 = sand.u32 %s60, 1
        %s284 = smul.addr %s283, 8
        %s285 = scalar_lea.vmem [#allocation6], %s284
        %p286 = pneg %p73
        %p287 = pneg %p70
        %p288 = pneg %p94
        %p289 = pneg %p91
        %p290 = pneg %p115
        %p291 = pneg %p112
        %p292 = pneg %p136
        %p293 = pneg %p133
        %p294 = pneg %p162
        %p295 = pneg %p159
        %s296 = sand.u32 %s149, 1
        %s297 = scalar_lea.sflag [#allocation5], %s296
        %s298 = sand.u32 %s149, 1
        %s299 = smul.addr %s298, 8
        %s300 = scalar_lea.vmem [#allocation9], %s299
        %s301 = smul.u32 8, %s26
        %v302 = vld [vmem:[%s253] sm:$0xff]
        %v303 = vld [vmem:[%s253 + $0x8] sm:$0xff]
        %v304 = vld [vmem:[%s253 + $0x10] sm:$0xff]
        %v305 = vld [vmem:[%s253 + $0x18] sm:$0xff]
        %v306 = vld [vmem:[%s253 + $0x20] sm:$0xff]
        %v307 = vld [vmem:[%s253 + $0x28] sm:$0xff]
        %v308 = vld [vmem:[%s253 + $0x30] sm:$0xff]
        %v309 = vld [vmem:[%s253 + $0x38] sm:$0xff]
        %v310 = vld [vmem:[#allocation8] sm:$0xff]
        %v311 = vld [vmem:[#allocation8 + $0x8] sm:$0xff]
        %v312 = vld [vmem:[#allocation8 + $0x10] sm:$0xff]
        %v313 = vld [vmem:[#allocation8 + $0x18] sm:$0xff]
        %vm314 = vcmask 261120
        %v316 = vsel %vm314, %v302, 0
        %v319 = vsel %vm314, %v303, 0
        %v322 = vsel %vm314, %v304, 0
        %v325 = vsel %vm314, %v305, 0
        %v328 = vsel %vm314, %v306, 0
        %v331 = vsel %vm314, %v307, 0
        %v334 = vsel %vm314, %v308, 0
        %v337 = vsel %vm314, %v309, 0
        %339 = vmatpush.msra.mxu0 0.0
        %340 = vmatpush.msra.mxu0 0.0
        %341 = vmatpush.msra.mxu0 0.0
        %342 = vmatpush.msra.mxu0 0.0
        %343 = vmatpush.msra.mxu0 0.0
        %344 = vmatpush.msra.mxu0 0.0
        %345 = vmatpush.msra.mxu0 0.0
        %346 = vmatpush.msra.mxu0 0.0
        %347 = vmatpush.msra.mxu0 0.0
        %348 = vmatpush.msra.mxu0 0.0
        %349 = vmatpush.msra.mxu0 0.0
        %350 = vmatpush.msra.mxu0 0.0
        %351 = vmatpush.msra.mxu0 %v313
        %352 = vmatpush.msra.mxu0 %v312
        %353 = vmatpush.msra.mxu0 %v311
        %354 = vmatpush.msra.mxu0 %v310
        %355 = vmatmul.f32.gmra.mxu0 %v316
        %v356 = vpop.f32.mrf.mxu0
        %v357 = vadd.f32 0.0, %v356
        %358 = vmatmul.f32.gmra.mxu0 %v319
        %v359 = vpop.f32.mrf.mxu0
        %v360 = vadd.f32 0.0, %v359
        %361 = vmatmul.f32.gmra.mxu0 %v322
        %v362 = vpop.f32.mrf.mxu0
        %v363 = vadd.f32 0.0, %v362
        %364 = vmatmul.f32.gmra.mxu0 %v325
        %v365 = vpop.f32.mrf.mxu0
        %v366 = vadd.f32 0.0, %v365
        %367 = vmatmul.f32.gmra.mxu0 %v328
        %v368 = vpop.f32.mrf.mxu0
        %v369 = vadd.f32 0.0, %v368
        %370 = vmatmul.f32.gmra.mxu0 %v331
        %v371 = vpop.f32.mrf.mxu0
        %v372 = vadd.f32 0.0, %v371
        %373 = vmatmul.f32.gmra.mxu0 %v334
        %v374 = vpop.f32.mrf.mxu0
        %v375 = vadd.f32 0.0, %v374
        %376 = vmatmul.f32.gmra.mxu0 %v337
        %v377 = vpop.f32.mrf.mxu0
        %v378 = vadd.f32 0.0, %v377
        %379 = vdwg.mxu0
        %v380 = vld [vmem:[%s263] sm:$0xff]
        %v382 = vrot.slane %v380, 1
        %v383 = vrot.slane %v380, 2
        %v384 = vrot.slane %v380, 3
        %v385 = vrot.slane %v380, 4
        %v386 = vrot.slane %v380, 5
        %v387 = vrot.slane %v380, 6
        %v388 = vrot.slane %v380, 7
        %v389 = vperm.slane %v380, 0
        %v390 = vperm.slane %v382, 0
        %v391 = vperm.slane %v383, 0
        %v392 = vperm.slane %v384, 0
        %v393 = vperm.slane %v385, 0
        %v394 = vperm.slane %v386, 0
        %v395 = vperm.slane %v387, 0
        %v396 = vperm.slane %v388, 0
        %v405 = vadd.f32 %v357, %v389
        %v406 = vadd.f32 %v360, %v390
        %v407 = vadd.f32 %v363, %v391
        %v408 = vadd.f32 %v366, %v392
        %v409 = vadd.f32 %v369, %v393
        %v410 = vadd.f32 %v372, %v394
        %v411 = vadd.f32 %v375, %v395
        %v412 = vadd.f32 %v378, %v396
        %v413 = vtanh.pop %v405
        %v414 = vtanh.pop %v406
        %v415 = vtanh.pop %v407
        %v416 = vtanh.pop %v408
        %v417 = vtanh.pop %v409
        %v418 = vtanh.pop %v410
        %v419 = vtanh.pop %v411
        %v420 = vtanh.pop %v412
        %v421 = vld [vmem:[%s3] sm:$0x1]
        %v423 = vperm.slane %v421, 0
        %v425 = vmul.f32 %v413, %v423
        %v426 = vmul.f32 %v414, %v423
        %v427 = vmul.f32 %v415, %v423
        %v428 = vmul.f32 %v416, %v423
        %v429 = vmul.f32 %v417, %v423
        %v430 = vmul.f32 %v418, %v423
        %v431 = vmul.f32 %v419, %v423
        %v432 = vmul.f32 %v420, %v423
        %v433 = vsel %vm314, %v425, 0.0
        %434 = vadd.xlane.f32.xlu0 %v433
        %v435 = vpop.xlane.xlu0 %434
        %v436 = vsel %vm314, %v426, 0.0
        %437 = vadd.xlane.f32.xlu0 %v436
        %v438 = vpop.xlane.xlu0 %437
        %v439 = vsel %vm314, %v427, 0.0
        %440 = vadd.xlane.f32.xlu0 %v439
        %v441 = vpop.xlane.xlu0 %440
        %v442 = vsel %vm314, %v428, 0.0
        %443 = vadd.xlane.f32.xlu0 %v442
        %v444 = vpop.xlane.xlu0 %443
        %v445 = vsel %vm314, %v429, 0.0
        %446 = vadd.xlane.f32.xlu0 %v445
        %v447 = vpop.xlane.xlu0 %446
        %v448 = vsel %vm314, %v430, 0.0
        %449 = vadd.xlane.f32.xlu0 %v448
        %v450 = vpop.xlane.xlu0 %449
        %v451 = vsel %vm314, %v431, 0.0
        %452 = vadd.xlane.f32.xlu0 %v451
        %v453 = vpop.xlane.xlu0 %452
        %v454 = vsel %vm314, %v432, 0.0
        %455 = vadd.xlane.f32.xlu0 %v454
        %v456 = vpop.xlane.xlu0 %455
        %s457 = sld [smem:[#allocation2]]
        %v458 = vstv %s457
        %v459 = vadd.f32 %v435, %v458
        %v460 = vadd.f32 %v438, %v458
        %v461 = vadd.f32 %v441, %v458
        %v462 = vadd.f32 %v444, %v458
        %v463 = vadd.f32 %v447, %v458
        %v464 = vadd.f32 %v450, %v458
        %v465 = vadd.f32 %v453, %v458
        %v466 = vadd.f32 %v456, %v458
        %v475 = vlaneseq
        %v476 = vand.u32 %v475, 127
        %v477 = vperm.slane %v459, %v476
        %v478 = vperm.slane %v460, %v476
        %v479 = vperm.slane %v461, %v476
        %v480 = vperm.slane %v462, %v476
        %v481 = vperm.slane %v463, %v476
        %v482 = vperm.slane %v464, %v476
        %v483 = vperm.slane %v465, %v476
        %v484 = vperm.slane %v466, %v476
        %vm485 = vcmask 1041409
        %v486 = vsel %vm485, %v478, %v477
        %vm487 = vcmask 1042434
        %v488 = vsel %vm487, %v479, %v486
        %vm489 = vcmask 1043459
        %v490 = vsel %vm489, %v480, %v488
        %vm491 = vcmask 1044484
        %v492 = vsel %vm491, %v481, %v490
        %vm493 = vcmask 1045509
        %v494 = vsel %vm493, %v482, %v492
        %vm495 = vcmask 1046534
        %v496 = vsel %vm495, %v483, %v494
        %vm497 = vcmask 1047559
        %v498 = vsel %vm497, %v484, %v496
        %vm500 = vcmask 64512
        %v501 = vsel %vm500, %v498, -inf
        %502 = vmax.xlane.f32.xlu0 %v501
        %v503 = vpop.xlane.xlu0 %502
        %v505 = vperm.slane %v503, 0
        %v506 = vperm.slane %v503, 1
        %v507 = vperm.slane %v503, 2
        %v508 = vperm.slane %v503, 3
        %v509 = vperm.slane %v503, 4
        %v510 = vperm.slane %v503, 5
        %v511 = vperm.slane %v503, 6
        %v512 = vperm.slane %v503, 7
        %v521 = vsub.f32 %v459, %v505
        %v522 = vsub.f32 %v460, %v506
        %v523 = vsub.f32 %v461, %v507
        %v524 = vsub.f32 %v462, %v508
        %v525 = vsub.f32 %v463, %v509
        %v526 = vsub.f32 %v464, %v510
        %v527 = vsub.f32 %v465, %v511
        %v528 = vsub.f32 %v466, %v512
        %v529 = vmul.f32 %v521, 1.442695
        %v530 = vpow.pop %v529
        %v531 = vmul.f32 %v522, 1.442695
        %v532 = vpow.pop %v531
        %v533 = vmul.f32 %v523, 1.442695
        %v534 = vpow.pop %v533
        %v535 = vmul.f32 %v524, 1.442695
        %v536 = vpow.pop %v535
        %v537 = vmul.f32 %v525, 1.442695
        %v538 = vpow.pop %v537
        %v539 = vmul.f32 %v526, 1.442695
        %v540 = vpow.pop %v539
        %v541 = vmul.f32 %v527, 1.442695
        %v542 = vpow.pop %v541
        %v543 = vmul.f32 %v528, 1.442695
        %v544 = vpow.pop %v543
        %553 = vset.pattern.permute.xlu0 0
        %554 = vperm.xlu0 %553, %v530
        %v555 = vpop.permute.xlu0 %554
        %556 = vset.pattern.permute.xlu0 0
        %557 = vperm.xlu0 %556, %v532
        %v558 = vpop.permute.xlu0 %557
        %559 = vset.pattern.permute.xlu0 0
        %560 = vperm.xlu0 %559, %v534
        %v561 = vpop.permute.xlu0 %560
        %562 = vset.pattern.permute.xlu0 0
        %563 = vperm.xlu0 %562, %v536
        %v564 = vpop.permute.xlu0 %563
        %565 = vset.pattern.permute.xlu0 0
        %566 = vperm.xlu0 %565, %v538
        %v567 = vpop.permute.xlu0 %566
        %568 = vset.pattern.permute.xlu0 0
        %569 = vperm.xlu0 %568, %v540
        %v570 = vpop.permute.xlu0 %569
        %571 = vset.pattern.permute.xlu0 0
        %572 = vperm.xlu0 %571, %v542
        %v573 = vpop.permute.xlu0 %572
        %574 = vset.pattern.permute.xlu0 0
        %575 = vperm.xlu0 %574, %v544
        %v576 = vpop.permute.xlu0 %575
        %v577 = vperm.slane %v555, %v476
        %v578 = vperm.slane %v558, %v476
        %v579 = vperm.slane %v561, %v476
        %v580 = vperm.slane %v564, %v476
        %v581 = vperm.slane %v567, %v476
        %v582 = vperm.slane %v570, %v476
        %v583 = vperm.slane %v573, %v476
        %v584 = vperm.slane %v576, %v476
        %v585 = vsel %vm485, %v578, %v577
        %v586 = vsel %vm487, %v579, %v585
        %v587 = vsel %vm489, %v580, %v586
        %v588 = vsel %vm491, %v581, %v587
        %v589 = vsel %vm493, %v582, %v588
        %v590 = vsel %vm495, %v583, %v589
        %v591 = vsel %vm497, %v584, %v590
        %v593 = vsel %vm500, %v591, 0.0
        %594 = vadd.xlane.f32.xlu0 %v593
        %v595 = vpop.xlane.xlu0 %594
        %v596 = vrcp.pop %v595
        %v598 = vperm.slane %v596, 0
        %v599 = vperm.slane %v596, 1
        %v600 = vperm.slane %v596, 2
        %v601 = vperm.slane %v596, 3
        %v602 = vperm.slane %v596, 4
        %v603 = vperm.slane %v596, 5
        %v604 = vperm.slane %v596, 6
        %v605 = vperm.slane %v596, 7
        %v614 = vmul.f32 %v530, %v598
        %v615 = vmul.f32 %v532, %v599
        %v616 = vmul.f32 %v534, %v600
        %v617 = vmul.f32 %v536, %v601
        %v618 = vmul.f32 %v538, %v602
        %v619 = vmul.f32 %v540, %v603
        %v620 = vmul.f32 %v542, %v604
        %v621 = vmul.f32 %v544, %v605
        %623 = vset.pattern.permute.xlu0 0
        %624 = vperm.xlu0 %623, %v614
        %v625 = vpop.permute.xlu0 %624
        %628 = vset.pattern.permute.xlu0 0
        %629 = vperm.xlu0 %628, %v615
        %v630 = vpop.permute.xlu0 %629
        %633 = vset.pattern.permute.xlu0 0
        %634 = vperm.xlu0 %633, %v616
        %v635 = vpop.permute.xlu0 %634
        %638 = vset.pattern.permute.xlu0 0
        %639 = vperm.xlu0 %638, %v617
        %v640 = vpop.permute.xlu0 %639
        %643 = vset.pattern.permute.xlu0 0
        %644 = vperm.xlu0 %643, %v618
        %v645 = vpop.permute.xlu0 %644
        %648 = vset.pattern.permute.xlu0 0
        %649 = vperm.xlu0 %648, %v619
        %v650 = vpop.permute.xlu0 %649
        %653 = vset.pattern.permute.xlu0 0
        %654 = vperm.xlu0 %653, %v620
        %v655 = vpop.permute.xlu0 %654
        %658 = vset.pattern.permute.xlu0 0
        %659 = vperm.xlu0 %658, %v621
        %v660 = vpop.permute.xlu0 %659
        %v662 = vmul.f32 %v302, %v625
        %v663 = vmul.f32 %v303, %v630
        %v664 = vmul.f32 %v304, %v635
        %v665 = vmul.f32 %v305, %v640
        %v666 = vmul.f32 %v306, %v645
        %v667 = vmul.f32 %v307, %v650
        %v668 = vmul.f32 %v308, %v655
        %v669 = vmul.f32 %v309, %v660
        %v670 = vsel %vm314, %v662, 0.0
        %v671 = vrot.slane %v670, 4
        %v672 = vadd.f32 %v670, %v671
        %v673 = vrot.slane %v672, 2
        %v674 = vadd.f32 %v672, %v673
        %v675 = vrot.slane %v674, 1
        %v676 = vadd.f32 %v674, %v675
        %v677 = vsel %vm314, %v663, 0.0
        %v678 = vrot.slane %v677, 4
        %v679 = vadd.f32 %v677, %v678
        %v680 = vrot.slane %v679, 2
        %v681 = vadd.f32 %v679, %v680
        %v682 = vrot.slane %v681, 1
        %v683 = vadd.f32 %v681, %v682
        %v684 = vsel %vm314, %v664, 0.0
        %v685 = vrot.slane %v684, 4
        %v686 = vadd.f32 %v684, %v685
        %v687 = vrot.slane %v686, 2
        %v688 = vadd.f32 %v686, %v687
        %v689 = vrot.slane %v688, 1
        %v690 = vadd.f32 %v688, %v689
        %v691 = vsel %vm314, %v665, 0.0
        %v692 = vrot.slane %v691, 4
        %v693 = vadd.f32 %v691, %v692
        %v694 = vrot.slane %v693, 2
        %v695 = vadd.f32 %v693, %v694
        %v696 = vrot.slane %v695, 1
        %v697 = vadd.f32 %v695, %v696
        %v698 = vsel %vm314, %v666, 0.0
        %v699 = vrot.slane %v698, 4
        %v700 = vadd.f32 %v698, %v699
        %v701 = vrot.slane %v700, 2
        %v702 = vadd.f32 %v700, %v701
        %v703 = vrot.slane %v702, 1
        %v704 = vadd.f32 %v702, %v703
        %v705 = vsel %vm314, %v667, 0.0
        %v706 = vrot.slane %v705, 4
        %v707 = vadd.f32 %v705, %v706
        %v708 = vrot.slane %v707, 2
        %v709 = vadd.f32 %v707, %v708
        %v710 = vrot.slane %v709, 1
        %v711 = vadd.f32 %v709, %v710
        %v712 = vsel %vm314, %v668, 0.0
        %v713 = vrot.slane %v712, 4
        %v714 = vadd.f32 %v712, %v713
        %v715 = vrot.slane %v714, 2
        %v716 = vadd.f32 %v714, %v715
        %v717 = vrot.slane %v716, 1
        %v718 = vadd.f32 %v716, %v717
        %v719 = vsel %vm314, %v669, 0.0
        %v720 = vrot.slane %v719, 4
        %v721 = vadd.f32 %v719, %v720
        %v722 = vrot.slane %v721, 2
        %v723 = vadd.f32 %v721, %v722
        %v724 = vrot.slane %v723, 1
        %v725 = vadd.f32 %v723, %v724
        %v734 = vsel %vm485, %v683, %v676
        %v735 = vsel %vm487, %v690, %v734
        %v736 = vsel %vm489, %v697, %v735
        %v737 = vsel %vm491, %v704, %v736
        %v738 = vsel %vm493, %v711, %v737
        %v739 = vsel %vm495, %v718, %v738
        %v740 = vsel %vm497, %v725, %v739
        %742 = vst.msk [vmem:[%s300] sm:$0xff] %vm314, %v740
        %s743 = sand.u32 %s149, 1
        %s744 = scalar_lea.sflag [#allocation5], %s743
        %s745 = sand.u32 %s149, 1
        %s746 = smul.addr %s745, 8
        %s747 = scalar_lea.vmem [#allocation9], %s746
        // Predicated region
        $region53: #{tpu_custom_call.1} parent=39 // pred_check
          %p748 = pneg %p159
        $region54: #{tpu_custom_call.1} parent=39 // pred_check_branch
          %750 = sbr.rel (%p748) target = $region56
        $region55: #{tpu_custom_call.1} parent=39 // pred_region
          %752 = vsyncadd %s744, 0
          %s753 = smul.addr %s26, 8
          %s754 = scalar_lea.hbm %s5, %s753
          %s756 = sshll.u32 %s747, 4
          %s757 = int_to_ptr.vmem [resolvable:$true] %s756
          %s758 = sshll.u32 %s754, 4
          %s759 = int_to_ptr.hbm [resolvable:$true] %s758
          %761 = dma.vmem_to_hbm [thread:$0]  %s757, 128, %s759, %s744
        $region56: #{tpu_custom_call.1} parent=39 // pred_fallthru
          _
      $region40: #{tpu_custom_call.1} parent=5 // pred_fallthru
        _
      %p762 = scmp.le.s32.totalorder 2, %s21
      // Predicated region
      $region57: #{tpu_custom_call.1} parent=5 // pred_check
        %p763 = pneg %p762
      $region58: #{tpu_custom_call.1} parent=5 // pred_check_branch
        %765 = sbr.rel (%p763) target = $region60
      $region59: #{tpu_custom_call.1} parent=5 // pred_region
        %s766 = ssub.s32 %s21, 2
        // Predicated region
        $region61: #{tpu_custom_call.1} parent=59 // pred_check
          %p767 = pneg %p165
        $region62: #{tpu_custom_call.1} parent=59 // pred_check_branch
          %769 = sbr.rel (%p767) target = $region64
        $region63: #{tpu_custom_call.1} parent=59 // pred_region
          %s770 = sand.u32 %s150, 1
          %s771 = scalar_lea.sflag [#allocation5], %s770
          %s772 = sand.u32 %s150, 1
          %s773 = smul.addr %s772, 8
          %s774 = scalar_lea.vmem [#allocation9], %s773
          %776 = dma.done %s771, 128
        $region64: #{tpu_custom_call.1} parent=59 // pred_fallthru
          _
      $region60: #{tpu_custom_call.1} parent=5 // pred_fallthru
        _
    $region6: #{tpu_custom_call.1} parent=1 // loop_footer
      %s25 = sadd.s32 1, %s21
    $region7: #{tpu_custom_call.1} parent=1 // loop_footer_branch
      %20 = sbr.rel target = $region3
    $region8: #{tpu_custom_call.1} parent=1 // loop_exit
      _
    %777 = vsyncpa [#allocation4], 1
    %s778 = scalar_lea.sflag [#allocation4], 1
    %779 = vsyncpa %s778, 1
    %780 = vsyncpa [#allocation7], 1
    %s781 = scalar_lea.sflag [#allocation7], 1
    %782 = vsyncpa %s781, 1
    %783 = vsyncpa [#allocation5], 1
    %s784 = scalar_lea.sflag [#allocation5], 1
    %785 = vsyncpa %s784, 1

</llo_original>
